<compile_context>
chip_gen: v7x
topology: tpu7x:2x2x1
jax: 0.10.0
libtpu: 0.0.40
codegen_flags: <defaults>
</compile_context>

<pallas_src>
import math
import functools

import jax
import jax.numpy as jnp
from jax import lax
from jax.experimental import pallas as pl
from jax.experimental.pallas import tpu as pltpu


# Large finite negative: exp() underflows to exactly 0, no inf-inf NaN risk.
_MASK_VALUE = -1e30


def _round_up(x, m):
    return (x + m - 1) // m * m


def _default_vmem_limit():
    # v5e/v6e: 128 MiB VMEM per core, v7x: 64 MiB. Derive the scoped limit from
    # the hardware (leave headroom) instead of hard-coding it.
    try:
        cap = int(pltpu.get_tpu_info().vmem_capacity_bytes)
        return max(32 * 1024 * 1024, min(cap - 16 * 1024 * 1024, (3 * cap) // 4))
    except Exception:
        return 48 * 1024 * 1024


# ---------------------------------------------------------------------------
# Kernel 1: fused K / V projections (single wide matmul).
# ---------------------------------------------------------------------------
def _kv_proj_kernel(x_ref, wkv_ref, k_ref, v_ref):
    # One dot with N = 2*d_out_p: fills the 256-wide MXU on v6e/v7x, reuses the
    # x tile once for both projections, halves MXU push/drain overhead.
    kv = jnp.dot(x_ref[...], wkv_ref[...], preferred_element_type=jnp.float32)
    d = k_ref.shape[-1]
    k_ref[...] = kv[:, :d].astype(k_ref.dtype)
    v_ref[...] = kv[:, d:].astype(v_ref.dtype)


# ---------------------------------------------------------------------------
# Kernel 2: flash-style causal attention with fused (scaled) Q projection,
# flattened lower-triangular schedule via scalar prefetch tables.
# ---------------------------------------------------------------------------
def _flash_attn_kernel(qi_tbl, kv_tbl, x_q_ref, wq_ref, k_ref, v_ref, o_ref,
                       q_sc, m_sc, l_sc, acc_sc,
                       *, scale, tq, tk, num_kv, compute_dtype, recip_approx):
    step = pl.program_id(1)
    qi = qi_tbl[step]
    kv = kv_tbl[step]
    q0 = qi * tq
    k0 = kv * tk
    # KV-tile index of the tile containing this q-tile's diagonal (last valid) column.
    kv_last = jnp.minimum((q0 + (tq - 1)) // tk, num_kv - 1)

    @pl.when(kv == 0)
    def _init():
        # Fused Q projection, computed once per (batch, q-tile).  The softmax
        # scale is folded into q (T*d muls instead of T*T per KV tile).
        q = jnp.dot(x_q_ref[...], wq_ref[...], preferred_element_type=jnp.float32)
        q_sc[...] = (q * scale).astype(q_sc.dtype)
        m_sc[...] = jnp.full(m_sc.shape, -jnp.inf, dtype=m_sc.dtype)
        l_sc[...] = jnp.zeros(l_sc.shape, dtype=l_sc.dtype)
        acc_sc[...] = jnp.zeros(acc_sc.shape, dtype=acc_sc.dtype)

    def _scores():
        # Contract feature dims of q and k directly (no k.T copy).
        return lax.dot_general(q_sc[...], k_ref[...],
                               (((1,), (1,)), ((), ())),
                               preferred_element_type=jnp.float32)   # (tq, tk)

    def _online_softmax_update(s):
        # All softmax statistics kept strictly f32 (safe on v5e as well).
        m_prev = m_sc[...]
        m_new = jnp.maximum(m_prev, jnp.max(s, axis=-1, keepdims=True))
        alpha = jnp.exp(m_prev - m_new)
        p = jnp.exp(s - m_new)
        l_sc[...] = alpha * l_sc[...] + jnp.sum(p, axis=-1, keepdims=True)
        acc_sc[...] = alpha * acc_sc[...] + jnp.dot(
            p.astype(compute_dtype), v_ref[...],
            preferred_element_type=jnp.float32)
        m_sc[...] = m_new

    # Diagonal-straddling tile: build and apply the causal mask.
    @pl.when(k0 + (tk - 1) > q0)
    def _masked_tile():
        s = _scores()
        offs = (lax.broadcasted_iota(jnp.int32, (tq, tk), 1)
                - lax.broadcasted_iota(jnp.int32, (tq, tk), 0))
        s = jnp.where(offs > (q0 - k0), _MASK_VALUE, s)
        _online_softmax_update(s)

    # Fully-past tile: skip all masking work (saves ~5 VPU ops per element).
    @pl.when(k0 + (tk - 1) <= q0)
    def _unmasked_tile():
        _online_softmax_update(_scores())

    @pl.when(kv == kv_last)
    def _finalize():
        inv_l = pl.reciprocal(l_sc[...], approx=recip_approx)
        o_ref[...] = (acc_sc[...] * inv_l).astype(o_ref.dtype)


# ---------------------------------------------------------------------------
# Wrapper.
# ---------------------------------------------------------------------------
def causal_attention(x, wq, wk, wv, *, dropout_p=0.0,
                     compute_dtype=jnp.bfloat16,
                     block_q=256, block_k=256,
                     vmem_limit_bytes=None):
    """Causal attention matching CasualAttention.forward (eval mode).

    x: (B, T, d_in); wq/wk/wv: (d_in, d_out) (nn.Linear weight transposed).
    Returns (B, T, d_out) in x.dtype.
    """
    if dropout_p != 0.0:
        # TODO(synk): train-mode attention-weight dropout needs an in-kernel
        # pltpu.prng_seed/prng_random_bits mask; eval mode (p=0) is exact.
        raise NotImplementedError("dropout_p > 0 is not supported")

    B, T, d_in = x.shape
    d_out = wq.shape[1]
    out_dtype = x.dtype
    scale = 1.0 / math.sqrt(d_out)        # keys.shape[-1] ** 0.5 in PyTorch
    compute_dtype = jnp.dtype(compute_dtype)
    recip_approx = compute_dtype != jnp.dtype(jnp.float32)
    if vmem_limit_bytes is None:
        vmem_limit_bytes = _default_vmem_limit()

    # ---- TPU-friendly padded shapes (lanes x128, sublanes x8) -----------------
    d_in_p = _round_up(d_in, 128)
    d_out_p = _round_up(d_out, 128)       # lane-dense output stores
    tq = _round_up(min(block_q, _round_up(T, 8)), 8)
    tk = _round_up(min(block_k, _round_up(T, 8)), 8)
    T_p = _round_up(T, math.lcm(tq, tk))
    num_q = T_p // tq
    num_kv = T_p // tk

    # Pad / cast only when actually needed (avoids an extra HBM pass over x).
    xc = x if x.dtype == compute_dtype else x.astype(compute_dtype)
    if (T_p, d_in_p) != (T, d_in):
        xc = jnp.pad(xc, ((0, 0), (0, T_p - T), (0, d_in_p - d_in)))

    def _prep_w(w):
        wc = w if w.dtype == compute_dtype else w.astype(compute_dtype)
        if (d_in_p, d_out_p) != (d_in, d_out):
            wc = jnp.pad(wc, ((0, d_in_p - d_in), (0, d_out_p - d_out)))
        return wc

    wq_p = _prep_w(wq)
    wkv_p = jnp.concatenate([_prep_w(wk), _prep_w(wv)], axis=1)   # (d_in_p, 2*d_out_p)

    itemsize = compute_dtype.itemsize

    # ---- kernel 1: fused K / V projections ------------------------------------
    # Projection row tile decoupled from the attention tk (bigger = fewer steps).
    tp = tk
    while tp * 2 <= min(T_p, 512) and T_p % (tp * 2) == 0:
        tp *= 2
    num_p = T_p // tp

    kv_cost = pl.CostEstimate(
        flops=2 * B * T_p * d_in_p * (2 * d_out_p),
        transcendentals=0,
        bytes_accessed=(B * T_p * d_in_p + 2 * d_in_p * d_out_p
                        + 2 * B * T_p * d_out_p) * itemsize)

    k_proj, v_proj = pl.pallas_call(
        _kv_proj_kernel,
        out_shape=(jax.ShapeDtypeStruct((B, T_p, d_out_p), compute_dtype),
                   jax.ShapeDtypeStruct((B, T_p, d_out_p), compute_dtype)),
        grid_spec=pltpu.PrefetchScalarGridSpec(
            num_scalar_prefetch=0,
            grid=(B, num_p),
            in_specs=[
                pl.BlockSpec((None, tp, d_in_p), lambda b, t: (b, t, 0)),
                pl.BlockSpec((d_in_p, 2 * d_out_p), lambda b, t: (0, 0)),
            ],
            out_specs=(
                pl.BlockSpec((None, tp, d_out_p), lambda b, t: (b, t, 0)),
                pl.BlockSpec((None, tp, d_out_p), lambda b, t: (b, t, 0)),
            ),
        ),
        compiler_params=pltpu.CompilerParams(
            dimension_semantics=("parallel", "parallel"),
            vmem_limit_bytes=vmem_limit_bytes),
        cost_estimate=kv_cost,
    )(xc, wkv_p)

    # ---- kernel 2: flash attention over a flattened lower-triangular grid -----
    # Only (qi, kv) pairs with kv*tk <= qi*tq + tq - 1 are ever stepped/DMA'd.
    qi_list, kv_list = [], []
    for qi in range(num_q):
        hi = min((qi * tq + tq - 1) // tk, num_kv - 1)
        for kv in range(hi + 1):
            qi_list.append(qi)
            kv_list.append(kv)
    num_steps = len(qi_list)
    qi_tbl = jnp.asarray(qi_list, dtype=jnp.int32)
    kv_tbl = jnp.asarray(kv_list, dtype=jnp.int32)

    attn_kernel = functools.partial(
        _flash_attn_kernel, scale=scale, tq=tq, tk=tk, num_kv=num_kv,
        compute_dtype=compute_dtype, recip_approx=recip_approx)

    attn_cost = pl.CostEstimate(
        flops=(2 * B * T_p * d_in_p * d_out_p                  # fused Q projection
               + 2 * 2 * B * num_steps * tq * tk * d_out_p),   # QK^T + PV, lower tri
        transcendentals=B * num_steps * tq * tk,
        bytes_accessed=(B * T_p * d_in_p + d_in_p * d_out_p
                        + 2 * B * num_steps * tk * d_out_p) * itemsize
                       + B * T_p * d_out_p * jnp.dtype(out_dtype).itemsize)

    # NOTE: if a profile shows exposed K/V DMA (tiny head dim), bump the K/V
    # BlockSpecs to pipeline_mode=pl.Buffered(3); default double-buffering here.
    out_p = pl.pallas_call(
        attn_kernel,
        out_shape=jax.ShapeDtypeStruct((B, T_p, d_out_p), out_dtype),
        grid_spec=pltpu.PrefetchScalarGridSpec(
            num_scalar_prefetch=2,
            grid=(B, num_steps),
            in_specs=[
                pl.BlockSpec((None, tq, d_in_p),
                             lambda b, s, qt, kt: (b, qt[s], 0)),
                pl.BlockSpec((d_in_p, d_out_p),
                             lambda b, s, qt, kt: (0, 0)),
                pl.BlockSpec((None, tk, d_out_p),
                             lambda b, s, qt, kt: (b, kt[s], 0)),
                pl.BlockSpec((None, tk, d_out_p),
                             lambda b, s, qt, kt: (b, kt[s], 0)),
            ],
            out_specs=pl.BlockSpec((None, tq, d_out_p),
                                   lambda b, s, qt, kt: (b, qt[s], 0)),
            scratch_shapes=[
                pltpu.VMEM((tq, d_out_p), compute_dtype),   # cached scaled Q tile
                pltpu.VMEM((tq, 1), jnp.float32),           # running max
                pltpu.VMEM((tq, 1), jnp.float32),           # running sum
                pltpu.VMEM((tq, d_out_p), jnp.float32),     # output accumulator
            ],
        ),
        compiler_params=pltpu.CompilerParams(
            dimension_semantics=("parallel", "arbitrary"),
            vmem_limit_bytes=vmem_limit_bytes),
        cost_estimate=attn_cost,
    )(qi_tbl, kv_tbl, xc, wq_p, k_proj, v_proj)

    return out_p[:, :T, :d_out]


# ---------------------------------------------------------------------------
# Pure-JAX reference (matches the PyTorch forward, eval mode).
# ---------------------------------------------------------------------------
def _reference(x, wq, wk, wv):
    q = x @ wq
    k = x @ wk
    v = x @ wv
    scores = jnp.einsum("btd,bsd->bts", q, k)
    T = x.shape[1]
    mask = jnp.triu(jnp.ones((T, T), dtype=bool), k=1)
    scores = jnp.where(mask[None], -jnp.inf, scores)
    attn = jax.nn.softmax(scores / math.sqrt(wq.shape[1]), axis=-1)
    return attn @ v


if __name__ == "__main__":
    # Small shapes consistent with the module: batch=2, num_tokens=8, d_in=32, d_out=16
    B, T, D_IN, D_OUT = 2, 8, 32, 16

    key = jax.random.PRNGKey(0)
    kx, kq, kk, kv = jax.random.split(key, 4)

    x = jax.random.normal(kx, (B, T, D_IN), dtype=jnp.float32)
    # nn.Linear weight is (d_out, d_in); we store the transposed (d_in, d_out).
    bound = 1.0 / math.sqrt(D_IN)
    wq = jax.random.uniform(kq, (D_IN, D_OUT), jnp.float32, -bound, bound)
    wk = jax.random.uniform(kk, (D_IN, D_OUT), jnp.float32, -bound, bound)
    wv = jax.random.uniform(kv, (D_IN, D_OUT), jnp.float32, -bound, bound)

    ref = _reference(x, wq, wk, wv)

    # Exact path: f32 operands everywhere.
    out_f32 = jax.block_until_ready(
        causal_attention(x, wq, wk, wv, compute_dtype=jnp.float32))
    assert out_f32.shape == (B, T, D_OUT), out_f32.shape
    assert jnp.allclose(out_f32, ref, atol=1e-4, rtol=1e-4), \
        float(jnp.max(jnp.abs(out_f32 - ref)))

    # Fast path (default): bf16 MXU operands, f32 accumulation / softmax.
    out_bf16 = jax.block_until_ready(causal_attention(x, wq, wk, wv))
    assert out_bf16.shape == (B, T, D_OUT), out_bf16.shape
    assert jnp.allclose(out_bf16, ref, atol=5e-2, rtol=5e-2), \
        float(jnp.max(jnp.abs(out_bf16 - ref)))

    # Multi-tile case: exercises the flattened lower-triangular schedule,
    # masked/unmasked tile branches, and the init/finalize accumulator logic.
    B2, T2 = 1, 192
    x2 = jax.random.normal(jax.random.fold_in(kx, 1), (B2, T2, D_IN), dtype=jnp.float32)
    ref2 = _reference(x2, wq, wk, wv)
    out2 = jax.block_until_ready(
        causal_attention(x2, wq, wk, wv, compute_dtype=jnp.float32,
                         block_q=64, block_k=64))
    assert out2.shape == (B2, T2, D_OUT), out2.shape
    assert jnp.allclose(out2, ref2, atol=1e-4, rtol=1e-4), \
        float(jnp.max(jnp.abs(out2 - ref2)))

    print("KERNEL_OK")
</pallas_src>

<mosaic_0001>
module attributes {stable_mosaic.version = 11 : i64} {
  func.func @_kv_proj_kernel(%arg0: i32, %arg1: i32, %arg2: memref<1x8x128xf32, #tpu.memory_space<vmem>>, %arg3: memref<128x256xf32, #tpu.memory_space<vmem>>, %arg4: memref<1x8x128xf32, #tpu.memory_space<vmem>>, %arg5: memref<1x8x128xf32, #tpu.memory_space<vmem>>) attributes {dimension_semantics = [#tpu.dimension_semantics<parallel>, #tpu.dimension_semantics<parallel>], iteration_bounds = array<i64: 2, 1>, scalar_prefetch = 0 : i64, scratch_operands = 0 : i64, tpu.core_type = #tpu.core_type<tc>, window_params = [{transform_indices = @transform_0, window_bounds = array<i64: 1, 8, 128>}, {pipeline_mode = #tpu.pipeline_mode<synchronous>, transform_indices = @transform_1, window_bounds = array<i64: 128, 256>}, {transform_indices = @transform_2, window_bounds = array<i64: 1, 8, 128>}, {transform_indices = @transform_3, window_bounds = array<i64: 1, 8, 128>}]} {
    %c0 = arith.constant 0 : index
    %c0_0 = arith.constant 0 : index
    %c0_1 = arith.constant 0 : index
    %0 = vector.load %arg2[%c0, %c0_0, %c0_1] : memref<1x8x128xf32, #tpu.memory_space<vmem>>, vector<1x8x128xf32>
    %1 = vector.shape_cast %0 : vector<1x8x128xf32> to vector<8x128xf32>
    %c0_2 = arith.constant 0 : index
    %c0_3 = arith.constant 0 : index
    %2 = vector.load %arg3[%c0_2, %c0_3] : memref<128x256xf32, #tpu.memory_space<vmem>>, vector<128x256xf32>
    %cst = arith.constant dense<0.000000e+00> : vector<8x256xf32>
    %3 = tpu.matmul %1, %2, %cst {dimension_numbers = #tpu.dot_dimension_numbers<[1], [0], [0], [1], [0, 0, 1, 1], [], []>} : vector<8x128xf32>, vector<128x256xf32>, vector<8x256xf32> -> vector<8x256xf32>
    %4 = vector.extract_strided_slice %3 {offsets = [0, 0], sizes = [8, 128], strides = [1, 1]} : vector<8x256xf32> to vector<8x128xf32>
    %c0_4 = arith.constant 0 : index
    %c0_5 = arith.constant 0 : index
    %c0_6 = arith.constant 0 : index
    %5 = vector.load %arg4[%c0_4, %c0_5, %c0_6] : memref<1x8x128xf32, #tpu.memory_space<vmem>>, vector<1x8x128xf32>
    %6 = vector.shape_cast %5 : vector<1x8x128xf32> to vector<8x128xf32>
    %7 = vector.shape_cast %4 : vector<8x128xf32> to vector<1x8x128xf32>
    tpu.vector_store %arg4[%c0_4, %c0_5, %c0_6], %7 {strides = array<i32>} : memref<1x8x128xf32, #tpu.memory_space<vmem>>, vector<1x8x128xf32>,
    %8 = vector.extract_strided_slice %3 {offsets = [0, 128], sizes = [8, 128], strides = [1, 1]} : vector<8x256xf32> to vector<8x128xf32>
    %c0_7 = arith.constant 0 : index
    %c0_8 = arith.constant 0 : index
    %c0_9 = arith.constant 0 : index
    %9 = vector.load %arg5[%c0_7, %c0_8, %c0_9] : memref<1x8x128xf32, #tpu.memory_space<vmem>>, vector<1x8x128xf32>
    %10 = vector.shape_cast %9 : vector<1x8x128xf32> to vector<8x128xf32>
    %11 = vector.shape_cast %8 : vector<8x128xf32> to vector<1x8x128xf32>
    tpu.vector_store %arg5[%c0_7, %c0_8, %c0_9], %11 {strides = array<i32>} : memref<1x8x128xf32, #tpu.memory_space<vmem>>, vector<1x8x128xf32>,
    return
  }
  func.func @transform_0(%arg0: i32, %arg1: i32) -> (i32, i32, i32) {
    %c0_i32 = arith.constant 0 : i32
    %c0_i32_0 = arith.constant 0 : i32
    return %arg0, %arg1, %c0_i32 : i32, i32, i32
  }
  func.func @transform_1(%arg0: i32, %arg1: i32) -> (i32, i32) {
    %c0_i32 = arith.constant 0 : i32
    %c0_i32_0 = arith.constant 0 : i32
    %c0_i32_1 = arith.constant 0 : i32
    return %c0_i32, %c0_i32_0 : i32, i32
  }
  func.func @transform_2(%arg0: i32, %arg1: i32) -> (i32, i32, i32) {
    %c0_i32 = arith.constant 0 : i32
    %c0_i32_0 = arith.constant 0 : i32
    return %arg0, %arg1, %c0_i32 : i32, i32, i32
  }
  func.func @transform_3(%arg0: i32, %arg1: i32) -> (i32, i32, i32) {
    %c0_i32 = arith.constant 0 : i32
    %c0_i32_0 = arith.constant 0 : i32
    return %arg0, %arg1, %c0_i32 : i32, i32, i32
  }
}

</mosaic_0001>

<llo_original>
// kernel: tpu_custom_call.1
$region0: #{tpu_custom_call.1}
  #allocation0 [shape = 'u32[]', space=smem, size = 0x4, offset = 0x4, fixed_abs, tag = 'smem constant byte address 0x4 - core index']
  #allocation1 [shape = 'u32[144,128]{1,0:T(1,128)}', space=vmem, size = 0x12000, scoped, tag = 'internal scratch']
  %s0 = inlined_call_operand.hbm [shape: f32[2,8,128], index: 0, kind: input, shape index: {}]
  %s1 = inlined_call_operand.hbm [shape: f32[128,256], index: 1, kind: input, shape index: {}]
  %s2 = inlined_call_operand.hbm [shape: f32[2,8,128], index: 2, kind: output, shape index: {0}]
  %s3 = inlined_call_operand.hbm [shape: f32[2,8,128], index: 3, kind: output, shape index: {1}]
  %4 = xla_tuple %s2, %s3
  %s5 = sld [smem:[#allocation0]]
  $region57: #{tpu_custom_call.1} parent=0
    _
  %s7 = ssub.s32 1, %s5
  %s8 = scalar_select 0, %s7, %s5
  $region1: #{tpu_custom_call.1} parent=0
    #allocation2 [shape = 'u8[8192]{0}', space=vmem, size = 0x2000, scoped, tag = 'input window, operand 0']
    #allocation3 [shape = 's32[2]{0}', space=sflag, size = 0x8, scoped, tag = 'scoped memory for tpu_custom_call.1']
    #allocation4 [shape = 's32[2]{0}', space=sflag, size = 0x8, scoped, tag = 'scoped memory for tpu_custom_call.1']
    #allocation5 [shape = 'u8[131072]{0}', space=vmem, size = 0x20000, scoped, tag = 'input window, operand 1, single buffered']
    #allocation6 [shape = 's32[1]{0}', space=sflag, size = 0x4, scoped, tag = 'scoped memory for tpu_custom_call.1']
    #allocation7 [shape = 'u8[8192]{0}', space=vmem, size = 0x2000, scoped, tag = 'output window, operand 0']
    #allocation8 [shape = 'u8[8192]{0}', space=vmem, size = 0x2000, scoped, tag = 'output window, operand 1']
    #allocation9 [shape = 's32[2]{0}', space=sflag, size = 0x8, scoped, tag = 'scoped memory for tpu_custom_call.1']
    %9 = vsyncpa [#allocation3], 0
    %s10 = scalar_lea.sflag [#allocation3], 1
    %11 = vsyncpa %s10, 0
    %12 = vsyncpa [#allocation6], 0
    %13 = vsyncpa [#allocation4], 0
    %s14 = scalar_lea.sflag [#allocation4], 1
    %15 = vsyncpa %s14, 0
    %16 = vsyncpa [#allocation9], 0
    %s17 = scalar_lea.sflag [#allocation9], 1
    %18 = vsyncpa %s17, 0
    loop: start=0, step=1, limit=4
    $region2: #{tpu_custom_call.1} parent=1 // loop_pre_header
      _
    $region3: #{tpu_custom_call.1} parent=1 // loop_header
      %s20 = sphi 0, %s24
      %p21 = scmp.ge.s32.totalorder %s20, 4
      %s27 = sphi 0, %s39
      %s28 = sphi 0, %s35
      %s29 = sphi 0, %s27
      %s30 = sphi 0, %s28
      %s31 = sphi 0, %s29
      %s32 = sphi 0, %s30
      %s44 = sphi 0, %s46
      %s47 = sphi 0, %s44
      %s48 = sphi 0, %s47
      %s64 = sphi 0, %s48
      %s68 = sphi 0, %s68
      %s70 = sphi 0, %s68
      %s71 = sphi 0, %s70
      %s85 = sphi 0, %s71
      %s93 = sphi 0, %s95
      %s96 = sphi 0, %s93
      %s97 = sphi 0, %s96
      %s113 = sphi 0, %s97
      %s121 = sphi 0, %s123
      %s124 = sphi 0, %s121
      %s125 = sphi 0, %s124
      %s141 = sphi 0, %s125
    $region4: #{tpu_custom_call.1} parent=1 // loop_header_branch
      %23 = sbr.rel (%p21) target = $region8
    $region5: #{tpu_custom_call.1} parent=1 // loop_body
      %s25 = ssub.s32 %s20, 1
      %s26 = ssub.s32 %s20, 2
      %s33 = sadd.s32 1, %s28
      %p34 = scmp.ge.s32.totalorder %s33, 1
      %s35 = scalar_select %p34, 0, %s33
      %s36 = sadd.s32 1, %s27
      %s37 = scalar_select %p34, %s36, %s27
      %p38 = scmp.ge.s32.totalorder %s37, 2
      %s39 = scalar_select %p38, 0, %s37
      %s40 = ssub.s32 %s27, %s39
      %s41 = ssub.s32 %s28, %s35
      %s42 = sor.u32 %s40, %s41
      %p43 = scmp.eq.s32.totalorder %s42, 0
      %s45 = sadd.s32 %s44, 1
      %s46 = scalar_select %p43, %s44, %s45
      %p49 = pneg %p43
      %p50 = scmp.eq.s32.totalorder %s20, 1
      %p51 = por %p49, %p50
      %p52 = scmp.ne.s32.totalorder %s44, %s47
      %p53 = scmp.eq.s32.totalorder %s20, 0
      %p54 = por %p52, %p53
      %p55 = scmp.ne.s32.totalorder %s44, %s47
      %p56 = scmp.eq.s32.totalorder %s25, 1
      %p57 = por %p55, %p56
      %p58 = scmp.ne.s32.totalorder %s47, %s48
      %p59 = scmp.eq.s32.totalorder %s25, 0
      %p60 = por %p58, %p59
      %p61 = scmp.ne.s32.totalorder %s47, %s48
      %p62 = scmp.eq.s32.totalorder %s26, 1
      %p63 = por %p61, %p62
      %p65 = scmp.ne.s32.totalorder %s48, %s64
      %p66 = scmp.eq.s32.totalorder %s26, 0
      %p67 = por %p65, %p66
      %s69 = sadd.s32 %s68, 1
      %p72 = scmp.eq.s32.totalorder %s20, 1
      %p73 = scmp.ne.s32.totalorder %s68, %s70
      %p74 = scmp.eq.s32.totalorder %s20, 0
      %p75 = por %p73, %p74
      %p76 = scmp.ne.s32.totalorder %s68, %s70
      %p77 = scmp.eq.s32.totalorder %s25, 1
      %p78 = por %p76, %p77
      %p79 = scmp.ne.s32.totalorder %s70, %s71
      %p80 = scmp.eq.s32.totalorder %s25, 0
      %p81 = por %p79, %p80
      %p82 = scmp.ne.s32.totalorder %s70, %s71
      %p83 = scmp.eq.s32.totalorder %s26, 1
      %p84 = por %p82, %p83
      %p86 = scmp.ne.s32.totalorder %s71, %s85
      %p87 = scmp.eq.s32.totalorder %s26, 0
      %p88 = por %p86, %p87
      %s89 = ssub.s32 %s27, %s39
      %s90 = ssub.s32 %s28, %s35
      %s91 = sor.u32 %s89, %s90
      %p92 = scmp.eq.s32.totalorder %s91, 0
      %s94 = sadd.s32 %s93, 1
      %s95 = scalar_select %p92, %s93, %s94
      %p98 = pneg %p92
      %p99 = scmp.eq.s32.totalorder %s20, 1
      %p100 = por %p98, %p99
      %p101 = scmp.ne.s32.totalorder %s93, %s96
      %p102 = scmp.eq.s32.totalorder %s20, 0
      %p103 = por %p101, %p102
      %p104 = scmp.ne.s32.totalorder %s93, %s96
      %p105 = scmp.eq.s32.totalorder %s25, 1
      %p106 = por %p104, %p105
      %p107 = scmp.ne.s32.totalorder %s96, %s97
      %p108 = scmp.eq.s32.totalorder %s25, 0
      %p109 = por %p107, %p108
      %p110 = scmp.ne.s32.totalorder %s96, %s97
      %p111 = scmp.eq.s32.totalorder %s26, 1
      %p112 = por %p110, %p111
      %p114 = scmp.ne.s32.totalorder %s97, %s113
      %p115 = scmp.eq.s32.totalorder %s26, 0
      %p116 = por %p114, %p115
      %s117 = ssub.s32 %s27, %s39
      %s118 = ssub.s32 %s28, %s35
      %s119 = sor.u32 %s117, %s118
      %p120 = scmp.eq.s32.totalorder %s119, 0
      %s122 = sadd.s32 %s121, 1
      %s123 = scalar_select %p120, %s121, %s122
      %p126 = pneg %p120
      %p127 = scmp.eq.s32.totalorder %s20, 1
      %p128 = por %p126, %p127
      %p129 = scmp.ne.s32.totalorder %s121, %s124
      %p130 = scmp.eq.s32.totalorder %s20, 0
      %p131 = por %p129, %p130
      %p132 = scmp.ne.s32.totalorder %s121, %s124
      %p133 = scmp.eq.s32.totalorder %s25, 1
      %p134 = por %p132, %p133
      %p135 = scmp.ne.s32.totalorder %s124, %s125
      %p136 = scmp.eq.s32.totalorder %s25, 0
      %p137 = por %p135, %p136
      %p138 = scmp.ne.s32.totalorder %s124, %s125
      %p139 = scmp.eq.s32.totalorder %s26, 1
      %p140 = por %p138, %p139
      %p142 = scmp.ne.s32.totalorder %s125, %s141
      %p143 = scmp.eq.s32.totalorder %s26, 0
      %p144 = por %p142, %p143
      %p145 = scmp.le.s32.totalorder 1, %s20
      %p146 = scmp.lt.s32.totalorder %s20, 3
      %p147 = pnand %p145, %p146
      %p148 = pneg %p147
      // Predicated region
      $region9: #{tpu_custom_call.1} parent=5 // pred_check
        _
      $region10: #{tpu_custom_call.1} parent=5 // pred_check_branch
        %150 = sbr.rel (%p147) target = $region12
      $region11: #{tpu_custom_call.1} parent=5 // pred_region
        %s151 = ssub.s32 %s20, 1
        // Predicated region
        $region13: #{tpu_custom_call.1} parent=11 // pred_check
          %p152 = pneg %p81
        $region14: #{tpu_custom_call.1} parent=11 // pred_check_branch
          %154 = sbr.rel (%p152) target = $region16
        $region15: #{tpu_custom_call.1} parent=11 // pred_region
          %s156 = ssub.s32 4096, 4096
          %157 = vsyncadd [#allocation6], %s156
          %s158 = sshll.u32 [#allocation5], 4
          %s159 = int_to_ptr.vmem [resolvable:$true] %s158
          %164 = dma.hbm_to_vmem [thread:$0]  %s1, 4096, %s159, [#allocation6], 256, 256, 16
        $region16: #{tpu_custom_call.1} parent=11 // pred_fallthru
          _
      $region12: #{tpu_custom_call.1} parent=5 // pred_fallthru
        _
      %p165 = scmp.lt.s32.totalorder %s20, 2
      // Predicated region
      $region17: #{tpu_custom_call.1} parent=5 // pred_check
        %p166 = pneg %p165
      $region18: #{tpu_custom_call.1} parent=5 // pred_check_branch
        %168 = sbr.rel (%p166) target = $region20
      $region19: #{tpu_custom_call.1} parent=5 // pred_region
        // Predicated region
        $region21: #{tpu_custom_call.1} parent=19 // pred_check
          %p169 = pneg %p54
        $region22: #{tpu_custom_call.1} parent=19 // pred_check_branch
          %171 = sbr.rel (%p169) target = $region24
        $region23: #{tpu_custom_call.1} parent=19 // pred_region
          %s172 = sand.u32 %s44, 1
          %s173 = scalar_lea.sflag [#allocation3], %s172
          %s174 = sand.u32 %s44, 1
          %s175 = smul.addr %s174, 8
          %s176 = scalar_lea.vmem [#allocation2], %s175
          %s178 = ssub.s32 128, 128
          %179 = vsyncadd %s173, %s178
          %s180 = sadd.s32 %s28, %s27
          %s181 = smul.addr %s180, 128
          %s182 = scalar_lea.hbm %s0, %s181
          %s184 = sshll.u32 %s176, 4
          %s185 = int_to_ptr.vmem [resolvable:$true] %s184
          %187 = dma.hbm_to_vmem [thread:$0]  %s182, 128, %s185, %s173
        $region24: #{tpu_custom_call.1} parent=19 // pred_fallthru
          _
      $region20: #{tpu_custom_call.1} parent=5 // pred_fallthru
        _
      %p188 = scmp.le.s32.totalorder 1, %s20
      %p189 = scmp.lt.s32.totalorder %s20, 3
      %p190 = pnand %p188, %p189
      %p191 = pneg %p190
      // Predicated region
      $region25: #{tpu_custom_call.1} parent=5 // pred_check
        _
      $region26: #{tpu_custom_call.1} parent=5 // pred_check_branch
        %193 = sbr.rel (%p190) target = $region28
      $region27: #{tpu_custom_call.1} parent=5 // pred_region
        %s194 = ssub.s32 %s20, 1
        %s195 = sand.u32 %s47, 1
        %s196 = scalar_lea.sflag [#allocation3], %s195
        %s197 = sand.u32 %s47, 1
        %s198 = smul.addr %s197, 8
        %s199 = scalar_lea.vmem [#allocation2], %s198
        // Predicated region
        $region29: #{tpu_custom_call.1} parent=27 // pred_check
          %p200 = pneg %p60
        $region30: #{tpu_custom_call.1} parent=27 // pred_check_branch
          %202 = sbr.rel (%p200) target = $region32
        $region31: #{tpu_custom_call.1} parent=27 // pred_region
          %203 = dma.done %s196, 128
        $region32: #{tpu_custom_call.1} parent=27 // pred_fallthru
          _
        // Predicated region
        $region33: #{tpu_custom_call.1} parent=27 // pred_check
          %p204 = pneg %p81
        $region34: #{tpu_custom_call.1} parent=27 // pred_check_branch
          %206 = sbr.rel (%p204) target = $region36
        $region35: #{tpu_custom_call.1} parent=27 // pred_region
          %207 = dma.done [#allocation6], 4096
        $region36: #{tpu_custom_call.1} parent=27 // pred_fallthru
          _
        %s208 = sand.u32 %s47, 1
        %s209 = scalar_lea.sflag [#allocation3], %s208
        %s210 = sand.u32 %s47, 1
        %s211 = smul.addr %s210, 8
        %s212 = scalar_lea.vmem [#allocation2], %s211
        %p213 = pneg %p60
        %p214 = pneg %p57
        %p215 = pneg %p81
        %p216 = pneg %p78
        %p217 = pneg %p109
        %p218 = pneg %p106
        %s219 = sand.u32 %s96, 1
        %s220 = scalar_lea.sflag [#allocation4], %s219
        %s221 = sand.u32 %s96, 1
        %s222 = smul.addr %s221, 8
        %s223 = scalar_lea.vmem [#allocation7], %s222
        %p224 = pneg %p137
        %p225 = pneg %p134
        %s226 = sand.u32 %s124, 1
        %s227 = scalar_lea.sflag [#allocation9], %s226
        %s228 = sand.u32 %s124, 1
        %s229 = smul.addr %s228, 8
        %s230 = scalar_lea.vmem [#allocation8], %s229
        %v231 = vld [vmem:[%s199] sm:$0xff]
        %v232 = vld [vmem:[#allocation5] sm:$0xff]
        %v233 = vld [vmem:[#allocation5 + $0x8] sm:$0xff]
        %v234 = vld [vmem:[#allocation5 + $0x10] sm:$0xff]
        %v235 = vld [vmem:[#allocation5 + $0x18] sm:$0xff]
        %v236 = vld [vmem:[#allocation5 + $0x20] sm:$0xff]
        %v237 = vld [vmem:[#allocation5 + $0x28] sm:$0xff]
        %v238 = vld [vmem:[#allocation5 + $0x30] sm:$0xff]
        %v239 = vld [vmem:[#allocation5 + $0x38] sm:$0xff]
        %v240 = vld [vmem:[#allocation5 + $0x40] sm:$0xff]
        %v241 = vld [vmem:[#allocation5 + $0x48] sm:$0xff]
        %v242 = vld [vmem:[#allocation5 + $0x50] sm:$0xff]
        %v243 = vld [vmem:[#allocation5 + $0x58] sm:$0xff]
        %v244 = vld [vmem:[#allocation5 + $0x60] sm:$0xff]
        %v245 = vld [vmem:[#allocation5 + $0x68] sm:$0xff]
        %v246 = vld [vmem:[#allocation5 + $0x70] sm:$0xff]
        %v247 = vld [vmem:[#allocation5 + $0x78] sm:$0xff]
        %v248 = vld [vmem:[#allocation5 + $0x80] sm:$0xff]
        %v249 = vld [vmem:[#allocation5 + $0x88] sm:$0xff]
        %v250 = vld [vmem:[#allocation5 + $0x90] sm:$0xff]
        %v251 = vld [vmem:[#allocation5 + $0x98] sm:$0xff]
        %v252 = vld [vmem:[#allocation5 + $0xa0] sm:$0xff]
        %v253 = vld [vmem:[#allocation5 + $0xa8] sm:$0xff]
        %v254 = vld [vmem:[#allocation5 + $0xb0] sm:$0xff]
        %v255 = vld [vmem:[#allocation5 + $0xb8] sm:$0xff]
        %v256 = vld [vmem:[#allocation5 + $0xc0] sm:$0xff]
        %v257 = vld [vmem:[#allocation5 + $0xc8] sm:$0xff]
        %v258 = vld [vmem:[#allocation5 + $0xd0] sm:$0xff]
        %v259 = vld [vmem:[#allocation5 + $0xd8] sm:$0xff]
        %v260 = vld [vmem:[#allocation5 + $0xe0] sm:$0xff]
        %v261 = vld [vmem:[#allocation5 + $0xe8] sm:$0xff]
        %v262 = vld [vmem:[#allocation5 + $0xf0] sm:$0xff]
        %v263 = vld [vmem:[#allocation5 + $0xf8] sm:$0xff]
        %264 = vmatprep.subr.mxu0 %v233
        %265 = vmatpush1.msra.mxu0 %v232
        %266 = vmatprep.subr.mxu0 %v235
        %267 = vmatpush1.msra.mxu0 %v234
        %268 = vmatprep.subr.mxu0 %v237
        %269 = vmatpush1.msra.mxu0 %v236
        %270 = vmatprep.subr.mxu0 %v239
        %271 = vmatpush1.msra.mxu0 %v238
        %272 = vmatprep.subr.mxu0 %v241
        %273 = vmatpush1.msra.mxu0 %v240
        %274 = vmatprep.subr.mxu0 %v243
        %275 = vmatpush1.msra.mxu0 %v242
        %276 = vmatprep.subr.mxu0 %v245
        %277 = vmatpush1.msra.mxu0 %v244
        %278 = vmatprep.subr.mxu0 %v247
        %279 = vmatpush1.msra.mxu0 %v246
        %280 = vmatprep.subr.mxu0 %v249
        %281 = vmatpush1.msra.mxu0 %v248
        %282 = vmatprep.subr.mxu0 %v251
        %283 = vmatpush1.msra.mxu0 %v250
        %284 = vmatprep.subr.mxu0 %v253
        %285 = vmatpush1.msra.mxu0 %v252
        %286 = vmatprep.subr.mxu0 %v255
        %287 = vmatpush1.msra.mxu0 %v254
        %288 = vmatprep.subr.mxu0 %v257
        %289 = vmatpush1.msra.mxu0 %v256
        %290 = vmatprep.subr.mxu0 %v259
        %291 = vmatpush1.msra.mxu0 %v258
        %292 = vmatprep.subr.mxu0 %v261
        %293 = vmatpush1.msra.mxu0 %v260
        %294 = vmatprep.subr.mxu0 %v263
        %295 = vmatpush1.msra.mxu0 %v262
        %296 = vmatprep.subr.mxu0 0.0
        %297 = vmatpush1.msra.mxu0 0.0
        %298 = vmatprep.subr.mxu0 0.0
        %299 = vmatpush1.msra.mxu0 0.0
        %300 = vmatprep.subr.mxu0 0.0
        %301 = vmatpush1.msra.mxu0 0.0
        %302 = vmatprep.subr.mxu0 0.0
        %303 = vmatpush1.msra.mxu0 0.0
        %304 = vmatprep.subr.mxu0 0.0
        %305 = vmatpush1.msra.mxu0 0.0
        %306 = vmatprep.subr.mxu0 0.0
        %307 = vmatpush1.msra.mxu0 0.0
        %308 = vmatprep.subr.mxu0 0.0
        %309 = vmatpush1.msra.mxu0 0.0
        %310 = vmatprep.subr.mxu0 0.0
        %311 = vmatpush1.msra.mxu0 0.0
        %312 = vmatprep.subr.mxu0 0.0
        %313 = vmatpush1.msra.mxu0 0.0
        %314 = vmatprep.subr.mxu0 0.0
        %315 = vmatpush1.msra.mxu0 0.0
        %316 = vmatprep.subr.mxu0 0.0
        %317 = vmatpush1.msra.mxu0 0.0
        %318 = vmatprep.subr.mxu0 0.0
        %319 = vmatpush1.msra.mxu0 0.0
        %320 = vmatprep.subr.mxu0 0.0
        %321 = vmatpush1.msra.mxu0 0.0
        %322 = vmatprep.subr.mxu0 0.0
        %323 = vmatpush1.msra.mxu0 0.0
        %324 = vmatprep.subr.mxu0 0.0
        %325 = vmatpush1.msra.mxu0 0.0
        %326 = vmatprep.subr.mxu0 0.0
        %327 = vmatpush1.msra.mxu0 0.0
        %328 = vmatprep.mubr.f32.mxu0 0.0
        %329 = vmatmul.mubr.f32.gmra.mrb[0].mxu0 %v231
        %v330 = vpop.f32.mrb[0].mxu0
        %v331 = vadd.f32 0.0, %v330
        %v332 = vpop.f32.mrb[0].mxu0
        %v333 = vadd.f32 0.0, %v332
        %334 = vdwg.mxu0
        %335 = vst [vmem:[%s223] sm:$0xff] %v331
        %336 = vst [vmem:[%s230] sm:$0xff] %v333
        %s337 = sand.u32 %s96, 1
        %s338 = scalar_lea.sflag [#allocation4], %s337
        %s339 = sand.u32 %s96, 1
        %s340 = smul.addr %s339, 8
        %s341 = scalar_lea.vmem [#allocation7], %s340
        %s342 = sand.u32 %s124, 1
        %s343 = scalar_lea.sflag [#allocation9], %s342
        %s344 = sand.u32 %s124, 1
        %s345 = smul.addr %s344, 8
        %s346 = scalar_lea.vmem [#allocation8], %s345
        // Predicated region
        $region37: #{tpu_custom_call.1} parent=27 // pred_check
          %p347 = pneg %p106
        $region38: #{tpu_custom_call.1} parent=27 // pred_check_branch
          %349 = sbr.rel (%p347) target = $region40
        $region39: #{tpu_custom_call.1} parent=27 // pred_region
          %s351 = ssub.s32 128, 128
          %352 = vsyncadd %s338, %s351
          %s353 = sadd.s32 %s30, %s29
          %s354 = smul.addr %s353, 128
          %s355 = scalar_lea.hbm %s2, %s354
          %s357 = sshll.u32 %s341, 4
          %s358 = int_to_ptr.vmem [resolvable:$true] %s357
          %360 = dma.vmem_to_hbm [thread:$0]  %s358, 128, %s355, %s338
        $region40: #{tpu_custom_call.1} parent=27 // pred_fallthru
          _
        // Predicated region
        $region41: #{tpu_custom_call.1} parent=27 // pred_check
          %p361 = pneg %p134
        $region42: #{tpu_custom_call.1} parent=27 // pred_check_branch
          %363 = sbr.rel (%p361) target = $region44
        $region43: #{tpu_custom_call.1} parent=27 // pred_region
          %s365 = ssub.s32 128, 128
          %366 = vsyncadd %s343, %s365
          %s367 = sadd.s32 %s30, %s29
          %s368 = smul.addr %s367, 128
          %s369 = scalar_lea.hbm %s3, %s368
          %s371 = sshll.u32 %s346, 4
          %s372 = int_to_ptr.vmem [resolvable:$true] %s371
          %374 = dma.vmem_to_hbm [thread:$0]  %s372, 128, %s369, %s343
        $region44: #{tpu_custom_call.1} parent=27 // pred_fallthru
          _
      $region28: #{tpu_custom_call.1} parent=5 // pred_fallthru
        _
      %p375 = scmp.le.s32.totalorder 2, %s20
      // Predicated region
      $region45: #{tpu_custom_call.1} parent=5 // pred_check
        %p376 = pneg %p375
      $region46: #{tpu_custom_call.1} parent=5 // pred_check_branch
        %378 = sbr.rel (%p376) target = $region48
      $region47: #{tpu_custom_call.1} parent=5 // pred_region
        %s379 = ssub.s32 %s20, 2
        // Predicated region
        $region49: #{tpu_custom_call.1} parent=47 // pred_check
          %p380 = pneg %p112
        $region50: #{tpu_custom_call.1} parent=47 // pred_check_branch
          %382 = sbr.rel (%p380) target = $region52
        $region51: #{tpu_custom_call.1} parent=47 // pred_region
          %s383 = sand.u32 %s97, 1
          %s384 = scalar_lea.sflag [#allocation4], %s383
          %s385 = sand.u32 %s97, 1
          %s386 = smul.addr %s385, 8
          %s387 = scalar_lea.vmem [#allocation7], %s386
          %388 = dma.done %s384, 128
        $region52: #{tpu_custom_call.1} parent=47 // pred_fallthru
          _
        // Predicated region
        $region53: #{tpu_custom_call.1} parent=47 // pred_check
          %p389 = pneg %p140
        $region54: #{tpu_custom_call.1} parent=47 // pred_check_branch
          %391 = sbr.rel (%p389) target = $region56
        $region55: #{tpu_custom_call.1} parent=47 // pred_region
          %s392 = sand.u32 %s125, 1
          %s393 = scalar_lea.sflag [#allocation9], %s392
          %s394 = sand.u32 %s125, 1
          %s395 = smul.addr %s394, 8
          %s396 = scalar_lea.vmem [#allocation8], %s395
          %397 = dma.done %s393, 128
        $region56: #{tpu_custom_call.1} parent=47 // pred_fallthru
          _
      $region48: #{tpu_custom_call.1} parent=5 // pred_fallthru
        _
    $region6: #{tpu_custom_call.1} parent=1 // loop_footer
      %s24 = sadd.s32 1, %s20
    $region7: #{tpu_custom_call.1} parent=1 // loop_footer_branch
      %19 = sbr.rel target = $region3
    $region8: #{tpu_custom_call.1} parent=1 // loop_exit
      _
    %398 = vsyncpa [#allocation3], 1
    %s399 = scalar_lea.sflag [#allocation3], 1
    %400 = vsyncpa %s399, 1
    %401 = vsyncpa [#allocation6], 1
    %402 = vsyncpa [#allocation4], 1
    %s403 = scalar_lea.sflag [#allocation4], 1
    %404 = vsyncpa %s403, 1
    %405 = vsyncpa [#allocation9], 1
    %s406 = scalar_lea.sflag [#allocation9], 1
    %407 = vsyncpa %s406, 1

</llo_original>
